<compile_context>
chip_gen: v7x
topology: tpu7x:2x2x1
jax: 0.10.0
libtpu: 0.0.40
codegen_flags: <defaults>
</compile_context>

<pallas_src>
import functools

import jax
import jax.numpy as jnp
from jax.experimental import pallas as pl
from jax.experimental.pallas import tpu as pltpu


# ----------------------------------------------------------------------------
# Tiling helpers
# ----------------------------------------------------------------------------
def _pick_tile(dim, target, align):
    """Tile for a non-reduction axis: full dim if small, else aligned tile."""
    if dim <= target:
        return dim
    t = (target // align) * align
    cand = t
    while cand >= align:            # prefer a divisor (avoids ragged blocks)
        if dim % cand == 0:
            return cand
        cand -= align
    return t                        # ragged last block (writes are masked)


def _pick_reduce_tile(dim, target, align):
    """Reduction-axis tile: must divide dim exactly (ragged K would corrupt acc)."""
    if dim <= target:
        return dim
    cand = (target // align) * align
    while cand >= align:
        if dim % cand == 0:
            return cand
        cand -= align
    return dim                      # fall back to full K


def _gelu(y):
    # tanh-approx GELU; BERT reference uses erf-GELU (negligible delta).
    return 0.5 * y * (1.0 + jnp.tanh(0.7978845608028654 * (y + 0.044715 * y * y * y)))


# ----------------------------------------------------------------------------
# Pallas kernels
# ----------------------------------------------------------------------------
def _matmul_kernel(x_ref, w_ref, b_ref, o_ref, acc_ref, *, act, rhs_transposed):
    """Tiled y = x @ w (+b, +act).  Grid: (M-tiles, N-tiles, K-tiles)."""
    kk = pl.program_id(2)

    @pl.when(kk == 0)
    def _init():
        acc_ref[...] = jnp.zeros_like(acc_ref)

    x = x_ref[...]
    w = w_ref[...]
    if rhs_transposed:
        # x: (tm, tk), w: (tn, tk) -> contract on K without materializing w.T
        acc_ref[...] += jax.lax.dot_general(
            x, w, (((1,), (1,)), ((), ())), preferred_element_type=jnp.float32)
    else:
        acc_ref[...] += jnp.dot(x, w, preferred_element_type=jnp.float32)

    @pl.when(kk == pl.num_programs(2) - 1)
    def _finalize():
        y = acc_ref[...] + b_ref[...].astype(jnp.float32)
        if act == "gelu":
            y = _gelu(y)
        o_ref[...] = y.astype(o_ref.dtype)


def _ln_kernel(x_ref, g_ref, b_ref, o_ref, *, eps):
    x = x_ref[...].astype(jnp.float32)
    mu = jnp.mean(x, axis=-1, keepdims=True)
    var = jnp.mean(jnp.square(x - mu), axis=-1, keepdims=True)
    y = (x - mu) * jax.lax.rsqrt(var + eps) * g_ref[...] + b_ref[...]
    o_ref[...] = y.astype(o_ref.dtype)


def _ln_residual_kernel(x_ref, r_ref, g_ref, b_ref, o_ref, *, eps):
    """LayerNorm(x + residual) — residual add fused into the LN kernel."""
    x = x_ref[...].astype(jnp.float32) + r_ref[...].astype(jnp.float32)
    mu = jnp.mean(x, axis=-1, keepdims=True)
    var = jnp.mean(jnp.square(x - mu), axis=-1, keepdims=True)
    y = (x - mu) * jax.lax.rsqrt(var + eps) * g_ref[...] + b_ref[...]
    o_ref[...] = y.astype(o_ref.dtype)


def _embed_ln_kernel(we_ref, te_ref, pe_ref, g_ref, b_ref, o_ref, *, eps):
    """LayerNorm(word_emb + type_emb + pos_emb) — embedding sum fused with LN."""
    x = (we_ref[0].astype(jnp.float32)
         + te_ref[0].astype(jnp.float32)
         + pe_ref[...].astype(jnp.float32))
    mu = jnp.mean(x, axis=-1, keepdims=True)
    var = jnp.mean(jnp.square(x - mu), axis=-1, keepdims=True)
    y = (x - mu) * jax.lax.rsqrt(var + eps) * g_ref[...] + b_ref[...]
    o_ref[0] = y.astype(o_ref.dtype)


def _attn_core(q, k, v, km_row, o_ref, num_heads, scale, causal):
    """All heads of softmax((q*scale) k^T + mask) @ v for one batch element.

    q/k/v stay in (S, D) layout; heads are sliced in VMEM, outputs are
    concatenated back so the store is a single lane-dense (Sq, D) write.
    """
    sq, d = q.shape
    skv = k.shape[0]
    dh = d // num_heads

    km = km_row.astype(jnp.float32)                  # (1, Skv)
    bias = (1.0 - km) * -1e9                          # broadcasts over queries
    if causal:
        row = jax.lax.broadcasted_iota(jnp.int32, (sq, skv), 0)
        col = jax.lax.broadcasted_iota(jnp.int32, (sq, skv), 1)
        bias = bias + jnp.where(row >= col, 0.0, -1e9)

    qs = q * jnp.asarray(scale, q.dtype)              # fold softmax scale into q
    outs = []
    for h in range(num_heads):
        qh = qs[:, h * dh:(h + 1) * dh]
        kh = k[:, h * dh:(h + 1) * dh]
        vh = v[:, h * dh:(h + 1) * dh]
        # contract head dim directly (no kh.T relayout)
        s = jax.lax.dot_general(
            qh, kh, (((1,), (1,)), ((), ())),
            preferred_element_type=jnp.float32) + bias
        s = s - jnp.max(s, axis=-1, keepdims=True)
        p = jnp.exp(s)
        p = p * pl.reciprocal(jnp.sum(p, axis=-1, keepdims=True), approx=True)
        outs.append(jnp.dot(p.astype(vh.dtype), vh,
                            preferred_element_type=jnp.float32))
    o_ref[0] = jnp.concatenate(outs, axis=-1).astype(o_ref.dtype)


def _mha_self_kernel(qkv_ref, km_ref, o_ref, *, num_heads, scale, causal, d):
    """Self-attention; q/k/v split from the fused (S, 3D) projection in VMEM."""
    x = qkv_ref[0]                                    # (Sq, 3D) bf16
    _attn_core(x[:, :d], x[:, d:2 * d], x[:, 2 * d:3 * d], km_ref[0],
               o_ref, num_heads, scale, causal)


def _mha_cross_kernel(q_ref, kv_ref, km_ref, o_ref, *, num_heads, scale, d):
    """Cross-attention; k/v split from the fused (Skv, 2D) projection in VMEM."""
    kv = kv_ref[0]                                    # (Skv, 2D) bf16
    _attn_core(q_ref[0], kv[:, :d], kv[:, d:2 * d], km_ref[0],
               o_ref, num_heads, scale, False)


# ----------------------------------------------------------------------------
# Pallas wrappers
# ----------------------------------------------------------------------------
def linear(x, w, b, act="none", out_dtype=None, rhs_transposed=False,
           tm=256, tn=512, tk=512):
    """x: (M, K); w: (K, N) or (N, K) if rhs_transposed; b: (N,)."""
    M, K = x.shape
    N = w.shape[0] if rhs_transposed else w.shape[1]
    out_dtype = out_dtype or x.dtype

    btm = _pick_tile(M, tm, 8)
    btn = _pick_tile(N, tn, 128)
    btk = _pick_reduce_tile(K, tk, 128)
    grid = (pl.cdiv(M, btm), pl.cdiv(N, btn), K // btk)

    if rhs_transposed:
        w_spec = pl.BlockSpec((btn, btk), lambda i, j, kk: (j, kk))
    else:
        w_spec = pl.BlockSpec((btk, btn), lambda i, j, kk: (kk, j))

    return pl.pallas_call(
        functools.partial(_matmul_kernel, act=act, rhs_transposed=rhs_transposed),
        out_shape=jax.ShapeDtypeStruct((M, N), out_dtype),
        grid=grid,
        in_specs=[
            pl.BlockSpec((btm, btk), lambda i, j, kk: (i, kk)),
            w_spec,
            pl.BlockSpec((1, btn), lambda i, j, kk: (0, j)),
        ],
        out_specs=pl.BlockSpec((btm, btn), lambda i, j, kk: (i, j)),
        scratch_shapes=[pltpu.VMEM((btm, btn), jnp.float32)],
        compiler_params=pltpu.CompilerParams(
            dimension_semantics=("parallel", "parallel", "arbitrary")),
    )(x, w, b.reshape(1, N))


def layernorm(x, gamma, beta, eps=1e-12):
    M, D = x.shape
    tm = _pick_tile(M, 256, 8)
    return pl.pallas_call(
        functools.partial(_ln_kernel, eps=eps),
        out_shape=jax.ShapeDtypeStruct((M, D), x.dtype),
        grid=(pl.cdiv(M, tm),),
        in_specs=[
            pl.BlockSpec((tm, D), lambda i: (i, 0)),
            pl.BlockSpec((1, D), lambda i: (0, 0)),
            pl.BlockSpec((1, D), lambda i: (0, 0)),
        ],
        out_specs=pl.BlockSpec((tm, D), lambda i: (i, 0)),
        compiler_params=pltpu.CompilerParams(dimension_semantics=("parallel",)),
    )(x, gamma, beta)


def layernorm_residual(x, res, gamma, beta, eps=1e-12):
    M, D = x.shape
    tm = _pick_tile(M, 256, 8)
    return pl.pallas_call(
        functools.partial(_ln_residual_kernel, eps=eps),
        out_shape=jax.ShapeDtypeStruct((M, D), x.dtype),
        grid=(pl.cdiv(M, tm),),
        in_specs=[
            pl.BlockSpec((tm, D), lambda i: (i, 0)),
            pl.BlockSpec((tm, D), lambda i: (i, 0)),
            pl.BlockSpec((1, D), lambda i: (0, 0)),
            pl.BlockSpec((1, D), lambda i: (0, 0)),
        ],
        out_specs=pl.BlockSpec((tm, D), lambda i: (i, 0)),
        compiler_params=pltpu.CompilerParams(dimension_semantics=("parallel",)),
    )(x, res, gamma, beta)


def embed_layernorm(word_e, type_e, pos_e, gamma, beta, eps=1e-12):
    """LayerNorm(word_e + type_e + pos_e); word_e/type_e: (B,S,D), pos_e: (S,D)."""
    B, S, D = word_e.shape
    ts = _pick_tile(S, 256, 8)
    return pl.pallas_call(
        functools.partial(_embed_ln_kernel, eps=eps),
        out_shape=jax.ShapeDtypeStruct((B, S, D), word_e.dtype),
        grid=(B, pl.cdiv(S, ts)),
        in_specs=[
            pl.BlockSpec((1, ts, D), lambda b, s: (b, s, 0)),
            pl.BlockSpec((1, ts, D), lambda b, s: (b, s, 0)),
            pl.BlockSpec((ts, D), lambda b, s: (s, 0)),
            pl.BlockSpec((1, D), lambda b, s: (0, 0)),
            pl.BlockSpec((1, D), lambda b, s: (0, 0)),
        ],
        out_specs=pl.BlockSpec((1, ts, D), lambda b, s: (b, s, 0)),
        compiler_params=pltpu.CompilerParams(
            dimension_semantics=("parallel", "parallel")),
    )(word_e, type_e, pos_e, gamma, beta)


def self_attention(qkv, key_mask, num_heads, causal):
    """qkv: (B, Sq, 3D) fused projection; key_mask: (B, 1, Sq) f32 (1 = keep)."""
    B, Sq, threeD = qkv.shape
    D = threeD // 3
    dh = D // num_heads
    scale = 1.0 / (dh ** 0.5)
    # TODO(synk): for very long sequences convert to a KV-blocked (flash-style)
    # online-softmax kernel; full (Sq, Skv) per batch is fine at BERT scales.
    return pl.pallas_call(
        functools.partial(_mha_self_kernel, num_heads=num_heads, scale=scale,
                          causal=causal, d=D),
        out_shape=jax.ShapeDtypeStruct((B, Sq, D), qkv.dtype),
        grid=(B,),
        in_specs=[
            pl.BlockSpec((1, Sq, 3 * D), lambda b: (b, 0, 0)),
            pl.BlockSpec((1, 1, Sq), lambda b: (b, 0, 0)),
        ],
        out_specs=pl.BlockSpec((1, Sq, D), lambda b: (b, 0, 0)),
        compiler_params=pltpu.CompilerParams(dimension_semantics=("parallel",)),
    )(qkv, key_mask)


def cross_attention(q, kv, key_mask, num_heads):
    """q: (B, Sq, D); kv: (B, Skv, 2D) fused projection; key_mask: (B,1,Skv)."""
    B, Sq, D = q.shape
    Skv = kv.shape[1]
    dh = D // num_heads
    scale = 1.0 / (dh ** 0.5)
    return pl.pallas_call(
        functools.partial(_mha_cross_kernel, num_heads=num_heads, scale=scale, d=D),
        out_shape=jax.ShapeDtypeStruct((B, Sq, D), q.dtype),
        grid=(B,),
        in_specs=[
            pl.BlockSpec((1, Sq, D), lambda b: (b, 0, 0)),
            pl.BlockSpec((1, Skv, 2 * D), lambda b: (b, 0, 0)),
            pl.BlockSpec((1, 1, Skv), lambda b: (b, 0, 0)),
        ],
        out_specs=pl.BlockSpec((1, Sq, D), lambda b: (b, 0, 0)),
        compiler_params=pltpu.CompilerParams(dimension_semantics=("parallel",)),
    )(q, kv, key_mask)


# ----------------------------------------------------------------------------
# BERT layer (glue around the Pallas kernels)
# ----------------------------------------------------------------------------
def _bert_layer(lp, h2, key_mask, B, S, D, num_heads, causal,
                video2=None, Sv=None, cross_key_mask=None):
    # --- self attention: fused QKV projection, split in-kernel ---
    qkv = linear(h2, lp["qkv_w"], lp["qkv_b"]).reshape(B, S, 3 * D)
    attn = self_attention(qkv, key_mask, num_heads, causal)
    ao = linear(attn.reshape(B * S, D), lp["ao_w"], lp["ao_b"])
    h2 = layernorm_residual(ao, h2, lp["aln_g"], lp["aln_b"])

    # --- cross attention onto video features (multimodal decoder path) ---
    if video2 is not None:
        xq = linear(h2, lp["xq_w"], lp["xq_b"]).reshape(B, S, D)
        xkv = linear(video2, lp["xkv_w"], lp["xkv_b"]).reshape(B, Sv, 2 * D)
        xattn = cross_attention(xq, xkv, cross_key_mask, num_heads)
        xo = linear(xattn.reshape(B * S, D), lp["xo_w"], lp["xo_b"])
        h2 = layernorm_residual(xo, h2, lp["xln_g"], lp["xln_b"])

    # --- feed-forward (bias + GELU fused into the matmul epilogue) ---
    f = linear(h2, lp["fi_w"], lp["fi_b"], act="gelu")
    fo = linear(f, lp["fo_w"], lp["fo_b"])
    h2 = layernorm_residual(fo, h2, lp["fln_g"], lp["fln_b"])
    return h2


# ----------------------------------------------------------------------------
# Model
# ----------------------------------------------------------------------------
class SharedTextMultimodalBertEncoderDecoder:
    # TODO(synk): BertTokenizer vocab-file loading and TokenMasker are host-side
    # string/IO utilities with no Pallas equivalent; special token ids are fixed.
    PAD_ID, CLS_ID, SEP_ID, MASK_ID = 0, 1, 2, 3

    def __init__(self, cfg, key):
        self.cfg = cfg
        self.pad_token = self.PAD_ID
        self.bos_token = self.CLS_ID    # '[CLS]'
        self.eos_token = self.SEP_ID    # '[SEP]'
        self.mask_token = self.MASK_ID  # '[MASK]'
        self.bert_multimodal_decoder_embed_dims = cfg["hidden_size"]
        self.bert_text_encoder_embed_dims = cfg["hidden_size"]
        self.params = self._init_params(key)

    def _init_params(self, key):
        cfg = self.cfg
        D, V, I = cfg["hidden_size"], cfg["vocab_size"], cfg["intermediate_size"]
        keys = iter(jax.random.split(key, 512))

        def nrm(shape):
            return (0.02 * jax.random.normal(next(keys), shape, jnp.float32)
                    ).astype(jnp.bfloat16)

        p = {
            "word_emb": nrm((V, D)),        # also the tied decoder weight (V, D)
            "pos_emb": nrm((cfg["max_position"], D)),
            "type_emb": nrm((cfg["type_vocab"], D)),
            "emb_ln_g": jnp.ones((1, D), jnp.float32),
            "emb_ln_b": jnp.zeros((1, D), jnp.float32),
            "layers": [],
        }
        for _ in range(cfg["num_layers"]):
            lp = {
                "qkv_w": nrm((D, 3 * D)), "qkv_b": jnp.zeros((3 * D,), jnp.float32),
                "ao_w": nrm((D, D)), "ao_b": jnp.zeros((D,), jnp.float32),
                "xq_w": nrm((D, D)), "xq_b": jnp.zeros((D,), jnp.float32),
                "xkv_w": nrm((D, 2 * D)), "xkv_b": jnp.zeros((2 * D,), jnp.float32),
                "xo_w": nrm((D, D)), "xo_b": jnp.zeros((D,), jnp.float32),
                "fi_w": nrm((D, I)), "fi_b": jnp.zeros((I,), jnp.float32),
                "fo_w": nrm((I, D)), "fo_b": jnp.zeros((D,), jnp.float32),
            }
            for name in ["aln", "xln", "fln"]:
                lp[name + "_g"] = jnp.ones((1, D), jnp.float32)
                lp[name + "_b"] = jnp.zeros((1, D), jnp.float32)
            p["layers"].append(lp)
        # Prediction head (decoder weight tied to word embeddings)
        p["ph_dense_w"] = nrm((D, D))
        p["ph_dense_b"] = jnp.zeros((D,), jnp.float32)
        p["ph_ln_g"] = jnp.ones((1, D), jnp.float32)
        p["ph_ln_b"] = jnp.zeros((1, D), jnp.float32)
        p["ph_decoder_b"] = jnp.zeros((V,), jnp.float32)
        return p

    # ----- shared BERT trunk -----
    def _bert_forward(self, tokens, task_prompt=None, video_feat=None, causal=False,
                      token_type=None, cross_attention_masks=None):
        p, cfg = self.params, self.cfg
        if task_prompt is not None:
            tokens = jnp.concatenate([task_prompt, tokens], axis=1)
            if token_type is not None:
                token_type = jnp.concatenate(
                    [jnp.zeros_like(task_prompt), token_type], axis=1)
        B, S = tokens.shape
        D = cfg["hidden_size"]
        if token_type is None:
            token_type = jnp.zeros((B, S), jnp.int32)

        # embedding gathers (XLA), sum + LayerNorm fused in one Pallas kernel
        we = jnp.take(p["word_emb"], tokens, axis=0)        # (B, S, D) bf16
        te = jnp.take(p["type_emb"], token_type, axis=0)    # (B, S, D) bf16
        pe = p["pos_emb"][:S]                                # (S, D)    bf16
        h2 = embed_layernorm(we, te, pe, p["emb_ln_g"], p["emb_ln_b"])
        h2 = h2.reshape(B * S, D)

        # key-padding mask (1 = attend); causal part is built inside the kernel
        key_mask = (tokens != self.pad_token).astype(jnp.float32).reshape(B, 1, S)

        video2, Sv, cross_key_mask = None, None, None
        if video_feat is not None:
            Sv = video_feat.shape[1]
            video2 = video_feat.reshape(B * Sv, D).astype(jnp.bfloat16)
            if cross_attention_masks is None:
                cm = jnp.ones((B, Sv), jnp.float32)
            else:
                cm = cross_attention_masks.astype(jnp.float32)
            cross_key_mask = cm.reshape(B, 1, Sv)

        for lp in p["layers"]:
            h2 = _bert_layer(lp, h2, key_mask, B, S, D, cfg["num_heads"], causal,
                             video2=video2, Sv=Sv, cross_key_mask=cross_key_mask)
        return h2.reshape(B, S, D).astype(jnp.float32)

    # ----- public API mirroring the PyTorch module -----
    def forward(self):
        print("Forward is not implemented.")

    def forward_bert_text_encoder(self, text_tokens, task_prompt=None,
                                  video_feat=None, causal=False):
        return self._bert_forward(
            text_tokens, task_prompt=task_prompt, video_feat=video_feat, causal=causal)

    def forward_bert_multimodal_decoder(self, text_tokens, task_prompt=None,
                                        video_feat=None, causal=True,
                                        token_type=None, cross_attention_masks=None):
        return self._bert_forward(
            text_tokens, task_prompt=task_prompt, video_feat=video_feat,
            causal=causal, token_type=token_type,
            cross_attention_masks=cross_attention_masks)

    def forward_bert_prediction_head(self, multimodal_text_features):
        p, cfg = self.params, self.cfg
        B, S, D = multimodal_text_features.shape
        V = cfg["vocab_size"]
        x = multimodal_text_features.reshape(B * S, D).astype(jnp.bfloat16)
        x = linear(x, p["ph_dense_w"], p["ph_dense_b"], act="gelu")
        x = layernorm(x, p["ph_ln_g"], p["ph_ln_b"])
        # tied decoder: logits = x @ word_emb^T — contract on D directly (no
        # HBM transpose) and tile over vocab/K so the weight never has to fit
        # VMEM in one block.
        logits = linear(x, p["word_emb"], p["ph_decoder_b"],
                        rhs_transposed=True, out_dtype=jnp.float32)
        return logits.reshape(B, S, V)


# ----------------------------------------------------------------------------
# Demo
# ----------------------------------------------------------------------------
if __name__ == "__main__":
    cfg = dict(
        vocab_size=128,
        hidden_size=32,
        num_layers=2,
        num_heads=4,
        intermediate_size=128,
        max_position=64,
        type_vocab=2,
    )
    root = jax.random.PRNGKey(0)
    k_params, k_tok, k_vid = jax.random.split(root, 3)

    model = SharedTextMultimodalBertEncoderDecoder(cfg, k_params)

    B, S, Sv = 2, 8, 4
    text_tokens = jax.random.randint(k_tok, (B, S), 4, cfg["vocab_size"], jnp.int32)
    text_tokens = text_tokens.at[:, 0].set(model.bos_token)
    text_tokens = text_tokens.at[:, -1].set(model.eos_token)
    video_feat = jax.random.normal(k_vid, (B, Sv, cfg["hidden_size"]), jnp.float32)

    # text encoder (bidirectional, no cross-attention)
    text_feats = model.forward_bert_text_encoder(text_tokens, causal=False)
    # multimodal decoder (causal self-attn + cross-attn onto video features)
    mm_feats = model.forward_bert_multimodal_decoder(
        text_tokens, video_feat=video_feat, causal=True)
    # prediction head over vocabulary (tied weights)
    logits = model.forward_bert_prediction_head(mm_feats)

    jax.block_until_ready((text_feats, mm_feats, logits))
    assert text_feats.shape == (B, S, cfg["hidden_size"])
    assert mm_feats.shape == (B, S, cfg["hidden_size"])
    assert logits.shape == (B, S, cfg["vocab_size"])
    assert bool(jnp.all(jnp.isfinite(text_feats)))
    assert bool(jnp.all(jnp.isfinite(logits)))
    print("KERNEL_OK")
</pallas_src>

<mosaic_0001>
module attributes {stable_mosaic.version = 11 : i64} {
  func.func @_embed_ln_kernel(%arg0: i32, %arg1: i32, %arg2: memref<1x8x32xbf16, #tpu.memory_space<vmem>>, %arg3: memref<1x8x32xbf16, #tpu.memory_space<vmem>>, %arg4: memref<8x32xbf16, #tpu.memory_space<vmem>>, %arg5: memref<1x32xf32, #tpu.memory_space<vmem>>, %arg6: memref<1x32xf32, #tpu.memory_space<vmem>>, %arg7: memref<1x8x32xbf16, #tpu.memory_space<vmem>>) attributes {dimension_semantics = [#tpu.dimension_semantics<parallel>, #tpu.dimension_semantics<parallel>], iteration_bounds = array<i64: 2, 1>, scalar_prefetch = 0 : i64, scratch_operands = 0 : i64, tpu.core_type = #tpu.core_type<tc>, window_params = [{transform_indices = @transform_0, window_bounds = array<i64: 1, 8, 32>}, {transform_indices = @transform_1, window_bounds = array<i64: 1, 8, 32>}, {transform_indices = @transform_2, window_bounds = array<i64: 8, 32>}, {pipeline_mode = #tpu.pipeline_mode<synchronous>, transform_indices = @transform_3, window_bounds = array<i64: 1, 32>}, {pipeline_mode = #tpu.pipeline_mode<synchronous>, transform_indices = @transform_4, window_bounds = array<i64: 1, 32>}, {transform_indices = @transform_5, window_bounds = array<i64: 1, 8, 32>}]} {
    %c0 = arith.constant 0 : index
    %c0_0 = arith.constant 0 : index
    %c0_1 = arith.constant 0 : index
    %0 = vector.load %arg2[%c0, %c0_0, %c0_1] : memref<1x8x32xbf16, #tpu.memory_space<vmem>>, vector<1x8x32xbf16>
    %1 = vector.shape_cast %0 : vector<1x8x32xbf16> to vector<8x32xbf16>
    %2 = arith.extf %1 : vector<8x32xbf16> to vector<8x32xf32>
    %c0_2 = arith.constant 0 : index
    %c0_3 = arith.constant 0 : index
    %c0_4 = arith.constant 0 : index
    %3 = vector.load %arg3[%c0_2, %c0_3, %c0_4] : memref<1x8x32xbf16, #tpu.memory_space<vmem>>, vector<1x8x32xbf16>
    %4 = vector.shape_cast %3 : vector<1x8x32xbf16> to vector<8x32xbf16>
    %5 = arith.extf %4 : vector<8x32xbf16> to vector<8x32xf32>
    %6 = arith.addf %2, %5 : vector<8x32xf32>
    %c0_5 = arith.constant 0 : index
    %c0_6 = arith.constant 0 : index
    %7 = vector.load %arg4[%c0_5, %c0_6] : memref<8x32xbf16, #tpu.memory_space<vmem>>, vector<8x32xbf16>
    %8 = arith.extf %7 : vector<8x32xbf16> to vector<8x32xf32>
    %9 = arith.addf %6, %8 : vector<8x32xf32>
    %cst = arith.constant dense<0.000000e+00> : vector<8xf32>
    %10 = vector.multi_reduction <add>, %9, %cst [1] : vector<8x32xf32> to vector<8xf32>
    %11 = vector.shape_cast %10 : vector<8xf32> to vector<8x1xf32>
    %cst_7 = arith.constant 3.200000e+01 : f32
    %12 = vector.broadcast %cst_7 : f32 to vector<8x1xf32>
    %13 = arith.divf %11, %12 : vector<8x1xf32>
    %14 = vector.broadcast %13 : vector<8x1xf32> to vector<8x32xf32>
    %15 = arith.subf %9, %14 : vector<8x32xf32>
    %16 = arith.mulf %15, %15 : vector<8x32xf32>
    %cst_8 = arith.constant dense<0.000000e+00> : vector<8xf32>
    %17 = vector.multi_reduction <add>, %16, %cst_8 [1] : vector<8x32xf32> to vector<8xf32>
    %18 = vector.shape_cast %17 : vector<8xf32> to vector<8x1xf32>
    %cst_9 = arith.constant 3.200000e+01 : f32
    %19 = vector.broadcast %cst_9 : f32 to vector<8x1xf32>
    %20 = arith.divf %18, %19 : vector<8x1xf32>
    %21 = vector.broadcast %13 : vector<8x1xf32> to vector<8x32xf32>
    %22 = arith.subf %9, %21 : vector<8x32xf32>
    %cst_10 = arith.constant 9.99999996E-13 : f32
    %23 = vector.broadcast %cst_10 : f32 to vector<8x1xf32>
    %24 = arith.addf %20, %23 : vector<8x1xf32>
    %25 = math.rsqrt %24 : vector<8x1xf32>
    %26 = vector.broadcast %25 : vector<8x1xf32> to vector<8x32xf32>
    %27 = arith.mulf %22, %26 : vector<8x32xf32>
    %c0_11 = arith.constant 0 : index
    %c0_12 = arith.constant 0 : index
    %28 = vector.load %arg5[%c0_11, %c0_12] : memref<1x32xf32, #tpu.memory_space<vmem>>, vector<1x32xf32>
    %29 = vector.broadcast %28 : vector<1x32xf32> to vector<8x32xf32>
    %30 = arith.mulf %27, %29 : vector<8x32xf32>
    %c0_13 = arith.constant 0 : index
    %c0_14 = arith.constant 0 : index
    %31 = vector.load %arg6[%c0_13, %c0_14] : memref<1x32xf32, #tpu.memory_space<vmem>>, vector<1x32xf32>
    %32 = vector.broadcast %31 : vector<1x32xf32> to vector<8x32xf32>
    %33 = arith.addf %30, %32 : vector<8x32xf32>
    %34 = arith.truncf %33 : vector<8x32xf32> to vector<8x32xbf16>
    %c0_15 = arith.constant 0 : index
    %c0_16 = arith.constant 0 : index
    %c0_17 = arith.constant 0 : index
    %35 = vector.load %arg7[%c0_15, %c0_16, %c0_17] : memref<1x8x32xbf16, #tpu.memory_space<vmem>>, vector<1x8x32xbf16>
    %36 = vector.shape_cast %35 : vector<1x8x32xbf16> to vector<8x32xbf16>
    %37 = vector.shape_cast %34 : vector<8x32xbf16> to vector<1x8x32xbf16>
    tpu.vector_store %arg7[%c0_15, %c0_16, %c0_17], %37 {strides = array<i32>} : memref<1x8x32xbf16, #tpu.memory_space<vmem>>, vector<1x8x32xbf16>,
    return
  }
  func.func @transform_0(%arg0: i32, %arg1: i32) -> (i32, i32, i32) {
    %c0_i32 = arith.constant 0 : i32
    %c0_i32_0 = arith.constant 0 : i32
    return %arg0, %arg1, %c0_i32 : i32, i32, i32
  }
  func.func @transform_1(%arg0: i32, %arg1: i32) -> (i32, i32, i32) {
    %c0_i32 = arith.constant 0 : i32
    %c0_i32_0 = arith.constant 0 : i32
    return %arg0, %arg1, %c0_i32 : i32, i32, i32
  }
  func.func @transform_2(%arg0: i32, %arg1: i32) -> (i32, i32) {
    %c0_i32 = arith.constant 0 : i32
    %c0_i32_0 = arith.constant 0 : i32
    return %arg1, %c0_i32 : i32, i32
  }
  func.func @transform_3(%arg0: i32, %arg1: i32) -> (i32, i32) {
    %c0_i32 = arith.constant 0 : i32
    %c0_i32_0 = arith.constant 0 : i32
    %c0_i32_1 = arith.constant 0 : i32
    return %c0_i32, %c0_i32_0 : i32, i32
  }
  func.func @transform_4(%arg0: i32, %arg1: i32) -> (i32, i32) {
    %c0_i32 = arith.constant 0 : i32
    %c0_i32_0 = arith.constant 0 : i32
    %c0_i32_1 = arith.constant 0 : i32
    return %c0_i32, %c0_i32_0 : i32, i32
  }
  func.func @transform_5(%arg0: i32, %arg1: i32) -> (i32, i32, i32) {
    %c0_i32 = arith.constant 0 : i32
    %c0_i32_0 = arith.constant 0 : i32
    return %arg0, %arg1, %c0_i32 : i32, i32, i32
  }
}

</mosaic_0001>

<llo_original>
// kernel: tpu_custom_call.1
$region0: #{tpu_custom_call.1}
  #allocation0 [shape = 'u32[]', space=smem, size = 0x4, offset = 0x4, fixed_abs, tag = 'smem constant byte address 0x4 - core index']
  #allocation1 [shape = 'u32[144,128]{1,0:T(1,128)}', space=vmem, size = 0x12000, scoped, tag = 'internal scratch']
  %s0 = inlined_call_operand.hbm [shape: bf16[2,8,32], index: 0, kind: input, shape index: {}]
  %s1 = inlined_call_operand.hbm [shape: bf16[2,8,32], index: 1, kind: input, shape index: {}]
  %s2 = inlined_call_operand.vmem [shape: bf16[8,32], index: 2, kind: input, shape index: {}]
  %s3 = inlined_call_operand.vmem [shape: f32[1,32], index: 3, kind: input, shape index: {}]
  %s4 = inlined_call_operand.vmem [shape: f32[1,32], index: 4, kind: input, shape index: {}]
  %s5 = inlined_call_operand.hbm [shape: bf16[2,8,32], index: 5, kind: output, shape index: {}]
  %s6 = sld [smem:[#allocation0]]
  $region61: #{tpu_custom_call.1} parent=0
    _
  %s8 = ssub.s32 1, %s6
  %s9 = scalar_select 0, %s8, %s6
  $region1: #{tpu_custom_call.1} parent=0
    #allocation2 [shape = 'u8[4096]{0}', space=vmem, size = 0x1000, scoped, tag = 'input window, operand 0']
    #allocation3 [shape = 's32[2]{0}', space=sflag, size = 0x8, scoped, tag = 'scoped memory for tpu_custom_call.1']
    #allocation4 [shape = 's32[2]{0}', space=sflag, size = 0x8, scoped, tag = 'scoped memory for tpu_custom_call.1']
    #allocation5 [shape = 'u8[4096]{0}', space=vmem, size = 0x1000, scoped, tag = 'input window, operand 1']
    #allocation6 [shape = 's32[2]{0}', space=sflag, size = 0x8, scoped, tag = 'scoped memory for tpu_custom_call.1']
    #allocation7 [shape = 'u8[4096]{0}', space=vmem, size = 0x1000, scoped, tag = 'output window, operand 0']
    %10 = vsyncpa [#allocation3], 0
    %s11 = scalar_lea.sflag [#allocation3], 1
    %12 = vsyncpa %s11, 0
    %13 = vsyncpa [#allocation6], 0
    %s14 = scalar_lea.sflag [#allocation6], 1
    %15 = vsyncpa %s14, 0
    %16 = vsyncpa [#allocation4], 0
    %s17 = scalar_lea.sflag [#allocation4], 1
    %18 = vsyncpa %s17, 0
    loop: start=0, step=1, limit=4
    $region2: #{tpu_custom_call.1} parent=1 // loop_pre_header
      _
    $region3: #{tpu_custom_call.1} parent=1 // loop_header
      %s20 = sphi 0, %s24
      %p21 = scmp.ge.s32.totalorder %s20, 4
      %s27 = sphi 0, %s39
      %s28 = sphi 0, %s35
      %s29 = sphi 0, %s27
      %s30 = sphi 0, %s28
      %s31 = sphi 0, %s29
      %s32 = sphi 0, %s30
      %s44 = sphi 0, %s46
      %s47 = sphi 0, %s44
      %s48 = sphi 0, %s47
      %s64 = sphi 0, %s48
      %s72 = sphi 0, %s74
      %s75 = sphi 0, %s72
      %s76 = sphi 0, %s75
      %s92 = sphi 0, %s76
      %s98 = sphi 0, %s100
      %s101 = sphi 0, %s98
      %s102 = sphi 0, %s101
      %s118 = sphi 0, %s102
      %s122 = sphi 0, %s122
      %s124 = sphi 0, %s122
      %s125 = sphi 0, %s124
      %s139 = sphi 0, %s125
      %s143 = sphi 0, %s143
      %s145 = sphi 0, %s143
      %s146 = sphi 0, %s145
      %s160 = sphi 0, %s146
      %s168 = sphi 0, %s170
      %s171 = sphi 0, %s168
      %s172 = sphi 0, %s171
      %s188 = sphi 0, %s172
    $region4: #{tpu_custom_call.1} parent=1 // loop_header_branch
      %23 = sbr.rel (%p21) target = $region8
    $region5: #{tpu_custom_call.1} parent=1 // loop_body
      %s25 = ssub.s32 %s20, 1
      %s26 = ssub.s32 %s20, 2
      %s33 = sadd.s32 1, %s28
      %p34 = scmp.ge.s32.totalorder %s33, 1
      %s35 = scalar_select %p34, 0, %s33
      %s36 = sadd.s32 1, %s27
      %s37 = scalar_select %p34, %s36, %s27
      %p38 = scmp.ge.s32.totalorder %s37, 2
      %s39 = scalar_select %p38, 0, %s37
      %s40 = ssub.s32 %s27, %s39
      %s41 = ssub.s32 %s28, %s35
      %s42 = sor.u32 %s40, %s41
      %p43 = scmp.eq.s32.totalorder %s42, 0
      %s45 = sadd.s32 %s44, 1
      %s46 = scalar_select %p43, %s44, %s45
      %p49 = pneg %p43
      %p50 = scmp.eq.s32.totalorder %s20, 1
      %p51 = por %p49, %p50
      %p52 = scmp.ne.s32.totalorder %s44, %s47
      %p53 = scmp.eq.s32.totalorder %s20, 0
      %p54 = por %p52, %p53
      %p55 = scmp.ne.s32.totalorder %s44, %s47
      %p56 = scmp.eq.s32.totalorder %s25, 1
      %p57 = por %p55, %p56
      %p58 = scmp.ne.s32.totalorder %s47, %s48
      %p59 = scmp.eq.s32.totalorder %s25, 0
      %p60 = por %p58, %p59
      %p61 = scmp.ne.s32.totalorder %s47, %s48
      %p62 = scmp.eq.s32.totalorder %s26, 1
      %p63 = por %p61, %p62
      %p65 = scmp.ne.s32.totalorder %s48, %s64
      %p66 = scmp.eq.s32.totalorder %s26, 0
      %p67 = por %p65, %p66
      %s68 = ssub.s32 %s27, %s39
      %s69 = ssub.s32 %s28, %s35
      %s70 = sor.u32 %s68, %s69
      %p71 = scmp.eq.s32.totalorder %s70, 0
      %s73 = sadd.s32 %s72, 1
      %s74 = scalar_select %p71, %s72, %s73
      %p77 = pneg %p71
      %p78 = scmp.eq.s32.totalorder %s20, 1
      %p79 = por %p77, %p78
      %p80 = scmp.ne.s32.totalorder %s72, %s75
      %p81 = scmp.eq.s32.totalorder %s20, 0
      %p82 = por %p80, %p81
      %p83 = scmp.ne.s32.totalorder %s72, %s75
      %p84 = scmp.eq.s32.totalorder %s25, 1
      %p85 = por %p83, %p84
      %p86 = scmp.ne.s32.totalorder %s75, %s76
      %p87 = scmp.eq.s32.totalorder %s25, 0
      %p88 = por %p86, %p87
      %p89 = scmp.ne.s32.totalorder %s75, %s76
      %p90 = scmp.eq.s32.totalorder %s26, 1
      %p91 = por %p89, %p90
      %p93 = scmp.ne.s32.totalorder %s76, %s92
      %p94 = scmp.eq.s32.totalorder %s26, 0
      %p95 = por %p93, %p94
      %s96 = ssub.s32 %s28, %s35
      %p97 = scmp.eq.s32.totalorder %s96, 0
      %s99 = sadd.s32 %s98, 1
      %s100 = scalar_select %p97, %s98, %s99
      %p103 = pneg %p97
      %p104 = scmp.eq.s32.totalorder %s20, 1
      %p105 = por %p103, %p104
      %p106 = scmp.ne.s32.totalorder %s98, %s101
      %p107 = scmp.eq.s32.totalorder %s20, 0
      %p108 = por %p106, %p107
      %p109 = scmp.ne.s32.totalorder %s98, %s101
      %p110 = scmp.eq.s32.totalorder %s25, 1
      %p111 = por %p109, %p110
      %p112 = scmp.ne.s32.totalorder %s101, %s102
      %p113 = scmp.eq.s32.totalorder %s25, 0
      %p114 = por %p112, %p113
      %p115 = scmp.ne.s32.totalorder %s101, %s102
      %p116 = scmp.eq.s32.totalorder %s26, 1
      %p117 = por %p115, %p116
      %p119 = scmp.ne.s32.totalorder %s102, %s118
      %p120 = scmp.eq.s32.totalorder %s26, 0
      %p121 = por %p119, %p120
      %s123 = sadd.s32 %s122, 1
      %p126 = scmp.eq.s32.totalorder %s20, 1
      %p127 = scmp.ne.s32.totalorder %s122, %s124
      %p128 = scmp.eq.s32.totalorder %s20, 0
      %p129 = por %p127, %p128
      %p130 = scmp.ne.s32.totalorder %s122, %s124
      %p131 = scmp.eq.s32.totalorder %s25, 1
      %p132 = por %p130, %p131
      %p133 = scmp.ne.s32.totalorder %s124, %s125
      %p134 = scmp.eq.s32.totalorder %s25, 0
      %p135 = por %p133, %p134
      %p136 = scmp.ne.s32.totalorder %s124, %s125
      %p137 = scmp.eq.s32.totalorder %s26, 1
      %p138 = por %p136, %p137
      %p140 = scmp.ne.s32.totalorder %s125, %s139
      %p141 = scmp.eq.s32.totalorder %s26, 0
      %p142 = por %p140, %p141
      %s144 = sadd.s32 %s143, 1
      %p147 = scmp.eq.s32.totalorder %s20, 1
      %p148 = scmp.ne.s32.totalorder %s143, %s145
      %p149 = scmp.eq.s32.totalorder %s20, 0
      %p150 = por %p148, %p149
      %p151 = scmp.ne.s32.totalorder %s143, %s145
      %p152 = scmp.eq.s32.totalorder %s25, 1
      %p153 = por %p151, %p152
      %p154 = scmp.ne.s32.totalorder %s145, %s146
      %p155 = scmp.eq.s32.totalorder %s25, 0
      %p156 = por %p154, %p155
      %p157 = scmp.ne.s32.totalorder %s145, %s146
      %p158 = scmp.eq.s32.totalorder %s26, 1
      %p159 = por %p157, %p158
      %p161 = scmp.ne.s32.totalorder %s146, %s160
      %p162 = scmp.eq.s32.totalorder %s26, 0
      %p163 = por %p161, %p162
      %s164 = ssub.s32 %s27, %s39
      %s165 = ssub.s32 %s28, %s35
      %s166 = sor.u32 %s164, %s165
      %p167 = scmp.eq.s32.totalorder %s166, 0
      %s169 = sadd.s32 %s168, 1
      %s170 = scalar_select %p167, %s168, %s169
      %p173 = pneg %p167
      %p174 = scmp.eq.s32.totalorder %s20, 1
      %p175 = por %p173, %p174
      %p176 = scmp.ne.s32.totalorder %s168, %s171
      %p177 = scmp.eq.s32.totalorder %s20, 0
      %p178 = por %p176, %p177
      %p179 = scmp.ne.s32.totalorder %s168, %s171
      %p180 = scmp.eq.s32.totalorder %s25, 1
      %p181 = por %p179, %p180
      %p182 = scmp.ne.s32.totalorder %s171, %s172
      %p183 = scmp.eq.s32.totalorder %s25, 0
      %p184 = por %p182, %p183
      %p185 = scmp.ne.s32.totalorder %s171, %s172
      %p186 = scmp.eq.s32.totalorder %s26, 1
      %p187 = por %p185, %p186
      %p189 = scmp.ne.s32.totalorder %s172, %s188
      %p190 = scmp.eq.s32.totalorder %s26, 0
      %p191 = por %p189, %p190
      %p192 = scmp.le.s32.totalorder 1, %s20
      %p193 = scmp.lt.s32.totalorder %s20, 3
      %p194 = pnand %p192, %p193
      %p195 = pneg %p194
      // Predicated region
      $region9: #{tpu_custom_call.1} parent=5 // pred_check
        _
      $region10: #{tpu_custom_call.1} parent=5 // pred_check_branch
        %197 = sbr.rel (%p194) target = $region12
      $region11: #{tpu_custom_call.1} parent=5 // pred_region
        %s198 = ssub.s32 %s20, 1
        // Predicated region
        $region13: #{tpu_custom_call.1} parent=11 // pred_check
          %p199 = pneg %p114
        $region14: #{tpu_custom_call.1} parent=11 // pred_check_branch
          %201 = sbr.rel (%p199) target = $region16
        $region15: #{tpu_custom_call.1} parent=11 // pred_region
          %p202 = scmp.lt.s32.totalorder %s30, 0
          %s203 = scalar_select %p202, %s30, 0
          %s204 = smul.addr %s203, 4
          %s205 = scalar_lea.vmem %s2, %s204
        $region16: #{tpu_custom_call.1} parent=11 // pred_fallthru
          _
        // Predicated region
        $region17: #{tpu_custom_call.1} parent=11 // pred_check
          %p206 = pneg %p135
        $region18: #{tpu_custom_call.1} parent=11 // pred_check_branch
          %208 = sbr.rel (%p206) target = $region20
        $region19: #{tpu_custom_call.1} parent=11 // pred_region
          _
        $region20: #{tpu_custom_call.1} parent=11 // pred_fallthru
          _
        // Predicated region
        $region21: #{tpu_custom_call.1} parent=11 // pred_check
          %p209 = pneg %p156
        $region22: #{tpu_custom_call.1} parent=11 // pred_check_branch
          %211 = sbr.rel (%p209) target = $region24
        $region23: #{tpu_custom_call.1} parent=11 // pred_region
          _
        $region24: #{tpu_custom_call.1} parent=11 // pred_fallthru
          _
      $region12: #{tpu_custom_call.1} parent=5 // pred_fallthru
        _
      %p212 = scmp.lt.s32.totalorder %s20, 2
      // Predicated region
      $region25: #{tpu_custom_call.1} parent=5 // pred_check
        %p213 = pneg %p212
      $region26: #{tpu_custom_call.1} parent=5 // pred_check_branch
        %215 = sbr.rel (%p213) target = $region28
      $region27: #{tpu_custom_call.1} parent=5 // pred_region
        // Predicated region
        $region29: #{tpu_custom_call.1} parent=27 // pred_check
          %p216 = pneg %p54
        $region30: #{tpu_custom_call.1} parent=27 // pred_check_branch
          %218 = sbr.rel (%p216) target = $region32
        $region31: #{tpu_custom_call.1} parent=27 // pred_region
          %s219 = sand.u32 %s44, 1
          %s220 = scalar_lea.sflag [#allocation3], %s219
          %s221 = sand.u32 %s44, 1
          %s222 = smul.addr %s221, 4
          %s223 = scalar_lea.vmem [#allocation2], %s222
          %s225 = ssub.s32 64, 64
          %226 = vsyncadd %s220, %s225
          %s227 = sadd.s32 %s28, %s27
          %s228 = smul.addr %s227, 64
          %s229 = scalar_lea.hbm %s0, %s228
          %s231 = sshll.u32 %s223, 4
          %s232 = int_to_ptr.vmem [resolvable:$true] %s231
          %234 = dma.hbm_to_vmem [thread:$0]  %s229, 64, %s232, %s220
        $region32: #{tpu_custom_call.1} parent=27 // pred_fallthru
          _
        // Predicated region
        $region33: #{tpu_custom_call.1} parent=27 // pred_check
          %p235 = pneg %p82
        $region34: #{tpu_custom_call.1} parent=27 // pred_check_branch
          %237 = sbr.rel (%p235) target = $region36
        $region35: #{tpu_custom_call.1} parent=27 // pred_region
          %s238 = sand.u32 %s72, 1
          %s239 = scalar_lea.sflag [#allocation6], %s238
          %s240 = sand.u32 %s72, 1
          %s241 = smul.addr %s240, 4
          %s242 = scalar_lea.vmem [#allocation5], %s241
          %s244 = ssub.s32 64, 64
          %245 = vsyncadd %s239, %s244
          %s246 = sadd.s32 %s28, %s27
          %s247 = smul.addr %s246, 64
          %s248 = scalar_lea.hbm %s1, %s247
          %s250 = sshll.u32 %s242, 4
          %s251 = int_to_ptr.vmem [resolvable:$true] %s250
          %253 = dma.hbm_to_vmem [thread:$0]  %s248, 64, %s251, %s239
        $region36: #{tpu_custom_call.1} parent=27 // pred_fallthru
          _
      $region28: #{tpu_custom_call.1} parent=5 // pred_fallthru
        _
      %p254 = scmp.le.s32.totalorder 1, %s20
      %p255 = scmp.lt.s32.totalorder %s20, 3
      %p256 = pnand %p254, %p255
      %p257 = pneg %p256
      // Predicated region
      $region37: #{tpu_custom_call.1} parent=5 // pred_check
        _
      $region38: #{tpu_custom_call.1} parent=5 // pred_check_branch
        %259 = sbr.rel (%p256) target = $region40
      $region39: #{tpu_custom_call.1} parent=5 // pred_region
        %s260 = ssub.s32 %s20, 1
        %s261 = sand.u32 %s47, 1
        %s262 = scalar_lea.sflag [#allocation3], %s261
        %s263 = sand.u32 %s47, 1
        %s264 = smul.addr %s263, 4
        %s265 = scalar_lea.vmem [#allocation2], %s264
        // Predicated region
        $region41: #{tpu_custom_call.1} parent=39 // pred_check
          %p266 = pneg %p60
        $region42: #{tpu_custom_call.1} parent=39 // pred_check_branch
          %268 = sbr.rel (%p266) target = $region44
        $region43: #{tpu_custom_call.1} parent=39 // pred_region
          %269 = dma.done %s262, 64
        $region44: #{tpu_custom_call.1} parent=39 // pred_fallthru
          _
        %s270 = sand.u32 %s75, 1
        %s271 = scalar_lea.sflag [#allocation6], %s270
        %s272 = sand.u32 %s75, 1
        %s273 = smul.addr %s272, 4
        %s274 = scalar_lea.vmem [#allocation5], %s273
        // Predicated region
        $region45: #{tpu_custom_call.1} parent=39 // pred_check
          %p275 = pneg %p88
        $region46: #{tpu_custom_call.1} parent=39 // pred_check_branch
          %277 = sbr.rel (%p275) target = $region48
        $region47: #{tpu_custom_call.1} parent=39 // pred_region
          %278 = dma.done %s271, 64
        $region48: #{tpu_custom_call.1} parent=39 // pred_fallthru
          _
        %s279 = sand.u32 %s47, 1
        %s280 = scalar_lea.sflag [#allocation3], %s279
        %s281 = sand.u32 %s47, 1
        %s282 = smul.addr %s281, 4
        %s283 = scalar_lea.vmem [#allocation2], %s282
        %p284 = pneg %p60
        %p285 = pneg %p57
        %s286 = sand.u32 %s75, 1
        %s287 = scalar_lea.sflag [#allocation6], %s286
        %s288 = sand.u32 %s75, 1
        %s289 = smul.addr %s288, 4
        %s290 = scalar_lea.vmem [#allocation5], %s289
        %p291 = pneg %p88
        %p292 = pneg %p85
        %p293 = scmp.lt.s32.totalorder %s30, 0
        %s294 = scalar_select %p293, %s30, 0
        %s295 = smul.addr %s294, 4
        %s296 = scalar_lea.vmem %s2, %s295
        %p297 = pneg %p114
        %p298 = pneg %p111
        %p299 = pneg %p135
        %p300 = pneg %p132
        %p301 = pneg %p156
        %p302 = pneg %p153
        %p303 = pneg %p184
        %p304 = pneg %p181
        %s305 = sand.u32 %s171, 1
        %s306 = scalar_lea.sflag [#allocation4], %s305
        %s307 = sand.u32 %s171, 1
        %s308 = smul.addr %s307, 4
        %s309 = scalar_lea.vmem [#allocation7], %s308
        %p310 = scmp.lt.s32.totalorder %s30, 0
        %s311 = scalar_select %p310, %s30, 0
        %s312 = smul.addr %s311, 4
        %s313 = scalar_lea.vmem %s2, %s312
        %v314 = vld [vmem:[%s265] sm:$0xf]
        %v315 = vunpack.c.l.bf16 %v314
        %v316 = vld [vmem:[%s274] sm:$0xf]
        %v317 = vunpack.c.l.bf16 %v316
        %v318 = vadd.f32 %v315, %v317
        %v319 = vld [vmem:[%s313] sm:$0xf]
        %v320 = vunpack.c.l.bf16 %v319
        %v321 = vadd.f32 %v318, %v320
        %vm322 = vcmask 261120
        %v323 = vsel %vm322, %v321, 0.0
        %324 = vadd.xlane.f32.xlu0 %v323
        %v325 = vpop.xlane.xlu0 %324
        %v326 = vrcp.pop 32.0
        %v327 = vmul.f32 %v325, %v326
        %v328 = vsub.f32 %v321, %v327
        %v329 = vmul.f32 %v328, %v328
        %v330 = vsel %vm322, %v329, 0.0
        %331 = vadd.xlane.f32.xlu0 %v330
        %v332 = vpop.xlane.xlu0 %331
        %v333 = vmul.f32 %v332, %v326
        %v334 = vadd.f32 %v333, 1e-12
        %v335 = vrsqrt.pop %v334
        %v336 = vmul.f32 %v328, %v335
        %v337 = vld [vmem:[%s3] sm:$0x1]
        %v339 = vlaneseq
        %v340 = vshrl.u32 %v339, 7
        %v341 = vsub.s32 0, %v340
        %v342 = vrot.slane %v337, %v341
        %v344 = vmul.f32 %v336, %v342
        %v345 = vld [vmem:[%s4] sm:$0x1]
        %v347 = vlaneseq
        %v348 = vshrl.u32 %v347, 7
        %v349 = vsub.s32 0, %v348
        %v350 = vrot.slane %v345, %v349
        %v352 = vadd.f32 %v344, %v350
        %v353 = vpack.c.bf16 %v352, %v352
        %vm354 = vcmask 257024
        %355 = vst.msk [vmem:[%s309] sm:$0xf] %vm354, %v353
        %s356 = sand.u32 %s171, 1
        %s357 = scalar_lea.sflag [#allocation4], %s356
        %s358 = sand.u32 %s171, 1
        %s359 = smul.addr %s358, 4
        %s360 = scalar_lea.vmem [#allocation7], %s359
        // Predicated region
        $region49: #{tpu_custom_call.1} parent=39 // pred_check
          %p361 = pneg %p181
        $region50: #{tpu_custom_call.1} parent=39 // pred_check_branch
          %363 = sbr.rel (%p361) target = $region52
        $region51: #{tpu_custom_call.1} parent=39 // pred_region
          %s365 = ssub.s32 64, 64
          %366 = vsyncadd %s357, %s365
          %s367 = sadd.s32 %s30, %s29
          %s368 = smul.addr %s367, 64
          %s369 = scalar_lea.hbm %s5, %s368
          %s371 = sshll.u32 %s360, 4
          %s372 = int_to_ptr.vmem [resolvable:$true] %s371
          %374 = dma.vmem_to_hbm [thread:$0]  %s372, 64, %s369, %s357
        $region52: #{tpu_custom_call.1} parent=39 // pred_fallthru
          _
      $region40: #{tpu_custom_call.1} parent=5 // pred_fallthru
        _
      %p375 = scmp.le.s32.totalorder 2, %s20
      // Predicated region
      $region53: #{tpu_custom_call.1} parent=5 // pred_check
        %p376 = pneg %p375
      $region54: #{tpu_custom_call.1} parent=5 // pred_check_branch
        %378 = sbr.rel (%p376) target = $region56
      $region55: #{tpu_custom_call.1} parent=5 // pred_region
        %s379 = ssub.s32 %s20, 2
        // Predicated region
        $region57: #{tpu_custom_call.1} parent=55 // pred_check
          %p380 = pneg %p187
        $region58: #{tpu_custom_call.1} parent=55 // pred_check_branch
          %382 = sbr.rel (%p380) target = $region60
        $region59: #{tpu_custom_call.1} parent=55 // pred_region
          %s383 = sand.u32 %s172, 1
          %s384 = scalar_lea.sflag [#allocation4], %s383
          %s385 = sand.u32 %s172, 1
          %s386 = smul.addr %s385, 4
          %s387 = scalar_lea.vmem [#allocation7], %s386
          %388 = dma.done %s384, 64
        $region60: #{tpu_custom_call.1} parent=55 // pred_fallthru
          _
      $region56: #{tpu_custom_call.1} parent=5 // pred_fallthru
        _
    $region6: #{tpu_custom_call.1} parent=1 // loop_footer
      %s24 = sadd.s32 1, %s20
    $region7: #{tpu_custom_call.1} parent=1 // loop_footer_branch
      %19 = sbr.rel target = $region3
    $region8: #{tpu_custom_call.1} parent=1 // loop_exit
      _
    %389 = vsyncpa [#allocation3], 1
    %s390 = scalar_lea.sflag [#allocation3], 1
    %391 = vsyncpa %s390, 1
    %392 = vsyncpa [#allocation6], 1
    %s393 = scalar_lea.sflag [#allocation6], 1
    %394 = vsyncpa %s393, 1
    %395 = vsyncpa [#allocation4], 1
    %s396 = scalar_lea.sflag [#allocation4], 1
    %397 = vsyncpa %s396, 1

</llo_original>
